<compile_context>
chip_gen: v7x
topology: tpu7x:2x2x1
jax: 0.10.0
libtpu: 0.0.40
codegen_flags: <defaults>
</compile_context>

<pallas_src>
import functools

import jax
import jax.numpy as jnp
from jax.experimental import pallas as pl
from jax.experimental.pallas import tpu as pltpu


def mc_dropout_kernel(bits_ref, x_ref, o_ref, *, threshold):
    # bits_ref holds raw uint32 randoms.  Keep element iff its top-24 bits
    # exceed threshold = floor(pdrop * 2^24)  <=>  uniform > pdrop.
    bits24 = bits_ref[...] >> jnp.uint32(8)
    keep = bits24 > jnp.uint32(threshold)
    x = x_ref[...]
    o_ref[...] = jnp.where(keep, x, jnp.zeros_like(x))


def _choose_slab(total, *, max_lanes=1024, max_block_rows=512):
    """Pick a lane-dense 2D slab (rows, lanes) and a block row count."""
    lanes = 128
    while lanes * 2 <= max_lanes and total % (lanes * 2) == 0:
        lanes *= 2
    rows = total // lanes
    if rows <= max_block_rows:
        block_rows = rows                      # single grid step
    else:
        block_rows = max_block_rows
        while block_rows > 8 and (rows % block_rows != 0):
            block_rows -= 8
        if rows % block_rows != 0:
            block_rows = 8                     # rows is a multiple of 8 here
    return rows, lanes, block_rows


def mc_dropout(x, pdrop=0.5, *, rng_key=None):
    """Apply MC dropout elementwise to an arbitrarily shaped array."""
    assert 0.0 <= pdrop <= 1.0
    if rng_key is None:
        rng_key = jax.random.PRNGKey(0)

    orig_shape = x.shape
    total = x.size
    lanes0 = 128
    pad = (-total) % lanes0
    xf = x.reshape(-1)
    if pad:
        xf = jnp.pad(xf, (0, pad))
    padded = total + pad

    rows, lanes, block_rows = _choose_slab(padded)
    x2 = xf.reshape(rows, lanes)

    # Host-side random bits (matches torch.rand(...) > p semantics; the mask
    # is just Bernoulli(1 - pdrop) per element, no 1/(1-p) rescale).
    bits = jax.random.bits(rng_key, (rows, lanes), dtype=jnp.uint32)

    threshold = min(int(pdrop * (1 << 24)), (1 << 24))  # keep iff bits24 > thr

    grid = (rows // block_rows,)
    out2 = pl.pallas_call(
        functools.partial(mc_dropout_kernel, threshold=threshold),
        out_shape=jax.ShapeDtypeStruct((rows, lanes), x.dtype),
        grid_spec=pltpu.PrefetchScalarGridSpec(
            num_scalar_prefetch=0,
            grid=grid,
            in_specs=[
                pl.BlockSpec((block_rows, lanes), lambda i: (i, 0)),  # bits
                pl.BlockSpec((block_rows, lanes), lambda i: (i, 0)),  # x
            ],
            out_specs=pl.BlockSpec((block_rows, lanes), lambda i: (i, 0)),
        ),
        compiler_params=pltpu.CompilerParams(
            dimension_semantics=("parallel",),  # blocks are independent
        ),
    )(bits, x2)

    out_flat = out2.reshape(-1)
    if pad:
        out_flat = out_flat[:total]
    return out_flat.reshape(orig_shape)


if __name__ == "__main__":
    key = jax.random.PRNGKey(0)
    # NCHW-like input consistent with typical use of McDropout on conv features.
    x = jax.random.normal(key, (2, 4, 16, 16), dtype=jnp.float32)

    pdrop = 0.5
    drop_key = jax.random.PRNGKey(1234)
    y = mc_dropout(x, pdrop=pdrop, rng_key=drop_key)
    y = jax.block_until_ready(y)

    # Sanity checks: every output element is either 0 or exactly the input.
    xf = jnp.ravel(x)
    yf = jnp.ravel(y)
    is_zero = jnp.isclose(yf, 0.0)
    is_passthrough = jnp.isclose(yf, xf)
    assert bool(jnp.all(is_zero | is_passthrough)), "dropout output malformed"
    keep_frac = float(jnp.mean(is_passthrough.astype(jnp.float32)))
    # Expected keep fraction ~ (1 - pdrop); loose statistical bound.
    assert 0.3 < keep_frac < 0.7, f"keep fraction {keep_frac} implausible for p=0.5"
    assert y.shape == x.shape and y.dtype == x.dtype

    print("KERNEL_OK")
</pallas_src>

<mosaic_0001>
module attributes {stable_mosaic.version = 11 : i64} {
  func.func @mc_dropout_kernel(%arg0: i32, %arg1: memref<2x1024xi32, #tpu.memory_space<vmem>>, %arg2: memref<2x1024xf32, #tpu.memory_space<vmem>>, %arg3: memref<2x1024xf32, #tpu.memory_space<vmem>>) attributes {dimension_semantics = [#tpu.dimension_semantics<parallel>], iteration_bounds = array<i64: 1>, scalar_prefetch = 0 : i64, scratch_operands = 0 : i64, tpu.core_type = #tpu.core_type<tc>, window_params = [{transform_indices = @transform_0, window_bounds = array<i64: 2, 1024>}, {transform_indices = @transform_1, window_bounds = array<i64: 2, 1024>}, {transform_indices = @transform_2, window_bounds = array<i64: 2, 1024>}]} {
    %c0 = arith.constant 0 : index
    %c0_0 = arith.constant 0 : index
    %0 = vector.load %arg1[%c0, %c0_0] : memref<2x1024xi32, #tpu.memory_space<vmem>>, vector<2x1024xi32>
    %c8_i32 = arith.constant 8 : i32
    %1 = vector.broadcast %c8_i32 : i32 to vector<2x1024xi32>
    %2 = arith.shrui %0, %1 : vector<2x1024xi32>
    %c8388608_i32 = arith.constant 8388608 : i32
    %3 = vector.broadcast %c8388608_i32 : i32 to vector<2x1024xi32>
    %4 = arith.cmpi ugt, %2, %3 : vector<2x1024xi32>
    %c0_1 = arith.constant 0 : index
    %c0_2 = arith.constant 0 : index
    %5 = vector.load %arg2[%c0_1, %c0_2] : memref<2x1024xf32, #tpu.memory_space<vmem>>, vector<2x1024xf32>
    %cst = arith.constant 0.000000e+00 : f32
    %6 = vector.broadcast %cst : f32 to vector<2x1024xf32>
    %7 = arith.select %4, %5, %6 : vector<2x1024xi1>, vector<2x1024xf32>
    %c0_3 = arith.constant 0 : index
    %c0_4 = arith.constant 0 : index
    %8 = vector.load %arg3[%c0_3, %c0_4] : memref<2x1024xf32, #tpu.memory_space<vmem>>, vector<2x1024xf32>
    tpu.vector_store %arg3[%c0_3, %c0_4], %7 {strides = array<i32>} : memref<2x1024xf32, #tpu.memory_space<vmem>>, vector<2x1024xf32>,
    return
  }
  func.func @transform_0(%arg0: i32) -> (i32, i32) {
    %c0_i32 = arith.constant 0 : i32
    %c0_i32_0 = arith.constant 0 : i32
    return %arg0, %c0_i32 : i32, i32
  }
  func.func @transform_1(%arg0: i32) -> (i32, i32) {
    %c0_i32 = arith.constant 0 : i32
    %c0_i32_0 = arith.constant 0 : i32
    return %arg0, %c0_i32 : i32, i32
  }
  func.func @transform_2(%arg0: i32) -> (i32, i32) {
    %c0_i32 = arith.constant 0 : i32
    %c0_i32_0 = arith.constant 0 : i32
    return %arg0, %c0_i32 : i32, i32
  }
}

</mosaic_0001>

<llo_original>
// kernel: tpu_custom_call.1
$region0: #{tpu_custom_call.1}
  #allocation0 [shape = 'u32[]', space=smem, size = 0x4, offset = 0x4, fixed_abs, tag = 'smem constant byte address 0x4 - core index']
  #allocation1 [shape = 'u32[144,128]{1,0:T(1,128)}', space=vmem, size = 0x12000, scoped, tag = 'internal scratch']
  %s0 = inlined_call_operand.hbm [shape: u32[2,1024], index: 0, kind: input, shape index: {}]
  %s1 = inlined_call_operand.hbm [shape: f32[2,1024], index: 1, kind: input, shape index: {}]
  %s2 = inlined_call_operand.hbm [shape: f32[2,1024], index: 2, kind: output, shape index: {}]
  %s3 = sld [smem:[#allocation0]]
  $region26: #{tpu_custom_call.1} parent=0
    _
  %s5 = ssub.s32 1, %s3
  %s6 = scalar_select 0, %s5, %s3
  $region1: #{tpu_custom_call.1} parent=0
    #allocation2 [shape = 'u8[8192]{0}', space=vmem, size = 0x2000, scoped, tag = 'input window, operand 0, single buffered']
    #allocation3 [shape = 's32[1]{0}', space=sflag, size = 0x4, scoped, tag = 'scoped memory for tpu_custom_call.1']
    #allocation4 [shape = 's32[1]{0}', space=sflag, size = 0x4, scoped, tag = 'scoped memory for tpu_custom_call.1']
    #allocation5 [shape = 'u8[8192]{0}', space=vmem, size = 0x2000, scoped, tag = 'input window, operand 1, single buffered']
    #allocation6 [shape = 's32[1]{0}', space=sflag, size = 0x4, scoped, tag = 'scoped memory for tpu_custom_call.1']
    #allocation7 [shape = 'u8[8192]{0}', space=vmem, size = 0x2000, scoped, tag = 'output window, operand 0, single buffered']
    %7 = vsyncpa [#allocation3], 0
    %8 = vsyncpa [#allocation6], 0
    %9 = vsyncpa [#allocation4], 0
    // Predicated region
    $region2: #{tpu_custom_call.1} parent=1 // pred_check
      _
    $region3: #{tpu_custom_call.1} parent=1 // pred_check_branch
      %11 = sbr.rel (0) target = $region5
    $region4: #{tpu_custom_call.1} parent=1 // pred_region
      %s13 = ssub.s32 256, 256
      %14 = vsyncadd [#allocation3], %s13
      %s16 = sshll.u32 [#allocation2], 4
      %s17 = int_to_ptr.vmem [resolvable:$true] %s16
      %19 = dma.hbm_to_vmem [thread:$0]  %s0, 256, %s17, [#allocation3]
    $region5: #{tpu_custom_call.1} parent=1 // pred_fallthru
      _
    // Predicated region
    $region6: #{tpu_custom_call.1} parent=1 // pred_check
      _
    $region7: #{tpu_custom_call.1} parent=1 // pred_check_branch
      %21 = sbr.rel (0) target = $region9
    $region8: #{tpu_custom_call.1} parent=1 // pred_region
      %s23 = ssub.s32 256, 256
      %24 = vsyncadd [#allocation6], %s23
      %s26 = sshll.u32 [#allocation5], 4
      %s27 = int_to_ptr.vmem [resolvable:$true] %s26
      %29 = dma.hbm_to_vmem [thread:$0]  %s1, 256, %s27, [#allocation6]
    $region9: #{tpu_custom_call.1} parent=1 // pred_fallthru
      _
    // Predicated region
    $region10: #{tpu_custom_call.1} parent=1 // pred_check
      _
    $region11: #{tpu_custom_call.1} parent=1 // pred_check_branch
      %31 = sbr.rel (0) target = $region13
    $region12: #{tpu_custom_call.1} parent=1 // pred_region
      %32 = dma.done [#allocation3], 256
    $region13: #{tpu_custom_call.1} parent=1 // pred_fallthru
      _
    // Predicated region
    $region14: #{tpu_custom_call.1} parent=1 // pred_check
      _
    $region15: #{tpu_custom_call.1} parent=1 // pred_check_branch
      %34 = sbr.rel (0) target = $region17
    $region16: #{tpu_custom_call.1} parent=1 // pred_region
      %35 = dma.done [#allocation6], 256
    $region17: #{tpu_custom_call.1} parent=1 // pred_fallthru
      _
    %v36 = vld [vmem:[#allocation2] sm:$0xff]
    %v37 = vld [vmem:[#allocation2 + $0x8] sm:$0xff]
    %v38 = vshrl.u32 %v36, 8
    %v39 = vshrl.u32 %v37, 8
    %vm40 = vcmp.gt.u32.totalorder %v38, 8388608
    %vm41 = vcmp.gt.u32.totalorder %v39, 8388608
    %v42 = vld [vmem:[#allocation5] sm:$0xff]
    %v43 = vld [vmem:[#allocation5 + $0x8] sm:$0xff]
    %v44 = vsel %vm40, %v42, 0.0
    %v45 = vsel %vm41, %v43, 0.0
    %46 = vst [vmem:[#allocation7] sm:$0xff] %v44
    %47 = vst [vmem:[#allocation7 + $0x8] sm:$0xff] %v45
    // Predicated region
    $region18: #{tpu_custom_call.1} parent=1 // pred_check
      _
    $region19: #{tpu_custom_call.1} parent=1 // pred_check_branch
      %49 = sbr.rel (0) target = $region21
    $region20: #{tpu_custom_call.1} parent=1 // pred_region
      %s51 = ssub.s32 256, 256
      %52 = vsyncadd [#allocation4], %s51
      %s54 = sshll.u32 [#allocation7], 4
      %s55 = int_to_ptr.vmem [resolvable:$true] %s54
      %57 = dma.vmem_to_hbm [thread:$0]  %s55, 256, %s2, [#allocation4]
    $region21: #{tpu_custom_call.1} parent=1 // pred_fallthru
      _
    // Predicated region
    $region22: #{tpu_custom_call.1} parent=1 // pred_check
      _
    $region23: #{tpu_custom_call.1} parent=1 // pred_check_branch
      %59 = sbr.rel (0) target = $region25
    $region24: #{tpu_custom_call.1} parent=1 // pred_region
      %60 = dma.done [#allocation4], 256
    $region25: #{tpu_custom_call.1} parent=1 // pred_fallthru
      _
    %61 = vsyncpa [#allocation3], 1
    %62 = vsyncpa [#allocation6], 1
    %63 = vsyncpa [#allocation4], 1

</llo_original>
